<compile_context>
chip_gen: v7x
topology: tpu7x:2x2x1
jax: 0.10.0
libtpu: 0.0.40
codegen_flags: <defaults>
</compile_context>

<pallas_src>
import jax
import jax.numpy as jnp
from jax.experimental import pallas as pl
from jax.experimental.pallas import tpu as pltpu


def _identity_kernel(x_ref, o_ref):
    # Pure pass-through of one lane-dense (block_rows, lanes) tile.
    o_ref[...] = x_ref[...]


# 48 MiB scoped VMEM: ample on v5e/v6e (128 MiB physical), safe on v7x (64 MiB).
_VMEM_LIMIT_BYTES = 48 << 20
# Per-tile budget: 8 MiB tiles -> 32 MiB resident with double-buffered in+out.
_TILE_BYTES_BUDGET = 8 << 20


def _pick_lanes(total):
    """Sublane-aware lane width (None => not lane-alignable without padding)."""
    rows_1024 = total // 1024
    if total % 1024 == 0 and rows_1024 >= 8 and rows_1024 % 8 == 0:
        return 1024
    if total % 128 == 0:
        return 128
    return None


def _pick_row_block(rows, lanes, itemsize):
    """Largest multiple-of-8 row block within the per-tile byte budget (<=512)."""
    max_rows_by_bytes = max(8, _TILE_BYTES_BUDGET // (lanes * itemsize))
    block = min(512, max_rows_by_bytes, rows)
    return max(8, (block // 8) * 8)


def _pallas_identity(x):
    """Identity copy via a lane-dense Pallas kernel (demo / template path)."""
    total = x.size
    lanes = _pick_lanes(total)
    if total == 0 or lanes is None:
        # Identity needs no kernel; a pad/unpad path would only add
        # full-tensor HBM passes (review item #2).
        return x

    rows = total // lanes
    x2 = x.reshape(rows, lanes)

    block_rows = _pick_row_block(rows, lanes, x.dtype.itemsize)
    grid = (pl.cdiv(rows, block_rows),)  # ragged last block handled by Pallas

    out2 = pl.pallas_call(
        _identity_kernel,
        out_shape=jax.ShapeDtypeStruct((rows, lanes), x.dtype),
        grid=grid,
        in_specs=[pl.BlockSpec((block_rows, lanes), lambda i: (i, 0))],
        out_specs=pl.BlockSpec((block_rows, lanes), lambda i: (i, 0)),
        compiler_params=pltpu.CompilerParams(
            dimension_semantics=("parallel",),
            vmem_limit_bytes=_VMEM_LIMIT_BYTES,
        ),
        cost_estimate=pl.CostEstimate(
            flops=0,
            transcendentals=0,
            bytes_accessed=2 * total * x.dtype.itemsize,
        ),
    )(x2)

    return out2.reshape(x.shape)


class AttnDecoder:
    """JAX/Pallas port of attnDecoder(in_channel, out_channel)."""

    def __init__(self, in_channel, out_channel):
        # TODO(synk): reference __init__ defines no layers/parameters; nothing
        # to initialize.
        self.in_channel = in_channel
        self.out_channel = out_channel

    def forward(self, x):
        # TODO(synk): reference forward body is `return` (returns None, no
        # compute).  No kernel is launched here — running one would be pure
        # dead work on the hot path (see performance review).
        return None

    __call__ = forward


if __name__ == "__main__":
    key = jax.random.PRNGKey(0)
    # Small NCHW input consistent with an (in_channel=4) decoder input.
    x = jax.random.normal(key, (2, 4, 16, 16), dtype=jnp.float32)

    # Run the lane-dense Pallas identity kernel once and verify it.
    y = jax.block_until_ready(_pallas_identity(x))
    assert y.shape == x.shape and y.dtype == x.dtype
    assert bool(jnp.all(y == x))

    # Also exercise the non-lane-alignable short-circuit path (no kernel).
    x_odd = jax.random.normal(key, (3, 5, 7), dtype=jnp.float32)
    y_odd = jax.block_until_ready(_pallas_identity(x_odd))
    assert bool(jnp.all(y_odd == x_odd))

    # Exercise the module exactly as PyTorch would.
    mod = AttnDecoder(in_channel=4, out_channel=4)
    out = mod(x)
    assert out is None  # matches torch forward semantics (returns None)

    print("KERNEL_OK")
</pallas_src>

<mosaic_0001>
module attributes {stable_mosaic.version = 11 : i64} {
  func.func @_identity_kernel(%arg0: i32, %arg1: memref<16x128xf32, #tpu.memory_space<vmem>>, %arg2: memref<16x128xf32, #tpu.memory_space<vmem>>) attributes {dimension_semantics = [#tpu.dimension_semantics<parallel>], iteration_bounds = array<i64: 1>, scalar_prefetch = 0 : i64, scratch_operands = 0 : i64, tpu.core_type = #tpu.core_type<tc>, window_params = [{transform_indices = @transform_0, window_bounds = array<i64: 16, 128>}, {transform_indices = @transform_1, window_bounds = array<i64: 16, 128>}]} {
    %c0 = arith.constant 0 : index
    %c0_0 = arith.constant 0 : index
    %0 = vector.load %arg1[%c0, %c0_0] : memref<16x128xf32, #tpu.memory_space<vmem>>, vector<16x128xf32>
    %c0_1 = arith.constant 0 : index
    %c0_2 = arith.constant 0 : index
    %1 = vector.load %arg2[%c0_1, %c0_2] : memref<16x128xf32, #tpu.memory_space<vmem>>, vector<16x128xf32>
    tpu.vector_store %arg2[%c0_1, %c0_2], %0 {strides = array<i32>} : memref<16x128xf32, #tpu.memory_space<vmem>>, vector<16x128xf32>,
    return
  }
  func.func @transform_0(%arg0: i32) -> (i32, i32) {
    %c0_i32 = arith.constant 0 : i32
    %c0_i32_0 = arith.constant 0 : i32
    return %arg0, %c0_i32 : i32, i32
  }
  func.func @transform_1(%arg0: i32) -> (i32, i32) {
    %c0_i32 = arith.constant 0 : i32
    %c0_i32_0 = arith.constant 0 : i32
    return %arg0, %c0_i32 : i32, i32
  }
}

</mosaic_0001>

<llo_original>
// kernel: tpu_custom_call.1
$region0: #{tpu_custom_call.1}
  #allocation0 [shape = 'u32[]', space=smem, size = 0x4, offset = 0x4, fixed_abs, tag = 'smem constant byte address 0x4 - core index']
  #allocation1 [shape = 'u32[144,128]{1,0:T(1,128)}', space=vmem, size = 0x12000, scoped, tag = 'internal scratch']
  %s0 = inlined_call_operand.hbm [shape: f32[16,128], index: 0, kind: input, shape index: {}]
  %s1 = inlined_call_operand.hbm [shape: f32[16,128], index: 1, kind: output, shape index: {}]
  %s2 = sld [smem:[#allocation0]]
  $region18: #{tpu_custom_call.1} parent=0
    _
  %s4 = ssub.s32 1, %s2
  %s5 = scalar_select 0, %s4, %s2
  $region1: #{tpu_custom_call.1} parent=0
    #allocation2 [shape = 'u8[8192]{0}', space=vmem, size = 0x2000, scoped, tag = 'input window, operand 0, single buffered']
    #allocation3 [shape = 's32[1]{0}', space=sflag, size = 0x4, scoped, tag = 'scoped memory for tpu_custom_call.1']
    #allocation4 [shape = 's32[1]{0}', space=sflag, size = 0x4, scoped, tag = 'scoped memory for tpu_custom_call.1']
    #allocation5 [shape = 'u8[8192]{0}', space=vmem, size = 0x2000, scoped, tag = 'output window, operand 0, single buffered']
    %6 = vsyncpa [#allocation3], 0
    %7 = vsyncpa [#allocation4], 0
    // Predicated region
    $region2: #{tpu_custom_call.1} parent=1 // pred_check
      _
    $region3: #{tpu_custom_call.1} parent=1 // pred_check_branch
      %9 = sbr.rel (0) target = $region5
    $region4: #{tpu_custom_call.1} parent=1 // pred_region
      %s11 = ssub.s32 256, 256
      %12 = vsyncadd [#allocation3], %s11
      %s13 = sshll.u32 [#allocation2], 4
      %s14 = int_to_ptr.vmem [resolvable:$true] %s13
      %19 = dma.hbm_to_vmem [thread:$0]  %s0, 256, %s14, [#allocation3], 128, 128, 8
    $region5: #{tpu_custom_call.1} parent=1 // pred_fallthru
      _
    // Predicated region
    $region6: #{tpu_custom_call.1} parent=1 // pred_check
      _
    $region7: #{tpu_custom_call.1} parent=1 // pred_check_branch
      %21 = sbr.rel (0) target = $region9
    $region8: #{tpu_custom_call.1} parent=1 // pred_region
      %22 = dma.done [#allocation3], 256
    $region9: #{tpu_custom_call.1} parent=1 // pred_fallthru
      _
    %v23 = vld [vmem:[#allocation2] sm:$0xff]
    %v24 = vld [vmem:[#allocation2 + $0x8] sm:$0xff]
    %25 = vst [vmem:[#allocation5] sm:$0xff] %v23
    %26 = vst [vmem:[#allocation5 + $0x8] sm:$0xff] %v24
    // Predicated region
    $region10: #{tpu_custom_call.1} parent=1 // pred_check
      _
    $region11: #{tpu_custom_call.1} parent=1 // pred_check_branch
      %28 = sbr.rel (0) target = $region13
    $region12: #{tpu_custom_call.1} parent=1 // pred_region
      %s30 = ssub.s32 256, 256
      %31 = vsyncadd [#allocation4], %s30
      %s32 = sshll.u32 [#allocation5], 4
      %s33 = int_to_ptr.vmem [resolvable:$true] %s32
      %38 = dma.vmem_to_hbm [thread:$0]  %s33, 256, %s1, [#allocation4], 128, 128, 8
    $region13: #{tpu_custom_call.1} parent=1 // pred_fallthru
      _
    // Predicated region
    $region14: #{tpu_custom_call.1} parent=1 // pred_check
      _
    $region15: #{tpu_custom_call.1} parent=1 // pred_check_branch
      %40 = sbr.rel (0) target = $region17
    $region16: #{tpu_custom_call.1} parent=1 // pred_region
      %41 = dma.done [#allocation4], 256
    $region17: #{tpu_custom_call.1} parent=1 // pred_fallthru
      _
    %42 = vsyncpa [#allocation3], 1
    %43 = vsyncpa [#allocation4], 1

</llo_original>
